<compile_context>
chip_gen: v5e
topology: v5e:2x2
jax: 0.10.0
libtpu: 0.0.40
codegen_flags: <defaults>
</compile_context>

<pallas_src>
import math

import jax
import jax.numpy as jnp
from jax.experimental import pallas as pl
from jax.experimental.pallas import tpu as pltpu

EPS = 1e-6


def _layernorm_kernel(alpha_ref, beta_ref, x_ref, o_ref):
    # x_ref: (row_tile, hidden) tile in VMEM; alpha/beta: (1,) scalars in SMEM.
    x = x_ref[...].astype(jnp.float32)
    n = x.shape[-1]
    # Single-pass statistics (one upcast slab live instead of x, diff, out).
    s = jnp.sum(x, axis=-1, keepdims=True)
    sq = jnp.sum(x * x, axis=-1, keepdims=True)
    mean = s * (1.0 / n)
    # torch.std default: unbiased estimator (divide by N-1).
    # NOTE: hidden == 1 yields NaN (0/0), same as torch.std on a single element.
    var = (sq - n * mean * mean) * (1.0 / (n - 1))
    var = jnp.maximum(var, 0.0)  # guard tiny negative values from cancellation
    std = jnp.sqrt(var)
    # Exact EUP reciprocal on the (row_tile, 1) vector (approx buys nothing in a
    # memory-bound kernel and costs ~2^-12 relative accuracy).
    rstd = pl.reciprocal(std + EPS)
    scale = alpha_ref[0] * rstd            # (row_tile, 1) per-row scale
    shift = beta_ref[0] - mean * scale     # (row_tile, 1) per-row shift
    # Fused full-tile FMA directly into the store: alpha*(x-mean)/(std+eps)+beta.
    o_ref[...] = (x * scale + shift).astype(o_ref.dtype)


def _round_up(x, m):
    return ((x + m - 1) // m) * m


def _vmem_capacity_bytes():
    # Generation-aware VMEM capacity; fall back to the smallest (v7x, 64 MiB)
    # if the query is unavailable (e.g. interpret mode off-TPU).
    try:
        return int(pltpu.get_tpu_info().vmem_capacity_bytes)
    except Exception:
        return 64 << 20


def layer_normalization(x, alpha, beta):
    """Pallas TPU LayerNormalization matching the PyTorch module semantics.

    Normalizes over the last axis; leading dims are flattened into rows and
    tiled on a 1-D grid. The row tile is sized from the real per-step VMEM
    footprint (double-buffered in/out blocks + f32 temporaries) against the
    queried VMEM capacity, then capped so large inputs still yield >= ~4 grid
    steps (keeps both v7x TensorCores busy).
    """
    orig_shape = x.shape
    hidden = orig_shape[-1]
    rows = int(math.prod(orig_shape[:-1])) if len(orig_shape) > 1 else 1
    x2 = x.reshape(rows, hidden)

    in_bytes_per_row = hidden * jnp.dtype(x.dtype).itemsize
    f32_bytes_per_row = hidden * 4
    # Per-row, per-step footprint:
    #   2x input block (double-buffered) + 2x output block (double-buffered)
    # + ~2 full-tile f32 temporaries the compiler may materialize.
    per_row_footprint = (2 * in_bytes_per_row) + (2 * in_bytes_per_row) + (2 * f32_bytes_per_row)

    vmem_cap = _vmem_capacity_bytes()
    budget = int(vmem_cap * 0.7)  # leave ~30% headroom for compiler scratch

    if 8 * per_row_footprint > budget:
        # TODO(synk): column-tiled two-pass fallback (second grid axis marked
        # "arbitrary" for the hidden reduction) for hidden sizes this large.
        raise ValueError(
            f"hidden={hidden} too large for a single row-tiled pass "
            f"(8-row footprint {8 * per_row_footprint} B > VMEM budget {budget} B)")

    rows_padded = _round_up(rows, 8)

    # Size the row tile from the VMEM budget, rounded to a sublane multiple of 8.
    row_tile = max(8, (budget // per_row_footprint) // 8 * 8)
    # Keep >= ~4 grid steps when the input allows it (v7x megacore occupancy).
    min_steps_cap = max(8, _round_up(pl.cdiv(rows_padded, 4), 8))
    row_tile = min(row_tile, min_steps_cap)
    # Never larger than the (padded) row count.
    row_tile = min(row_tile, rows_padded)

    # Ragged last block: reads past `rows` feed only rows whose writes Pallas
    # drops, so no host-side padding/concatenate (and no extra HBM copy) needed.
    grid = (pl.cdiv(rows, row_tile),)

    # Request just enough scoped VMEM for the real footprint (+25%), capped at
    # physical capacity; avoids both v7x OOM and artificially small tiles.
    step_footprint = row_tile * per_row_footprint
    vmem_limit_bytes = min(vmem_cap, max(32 << 20, int(step_footprint * 1.25)))

    # TODO(synk): for hidden < 128, repack to a lane-dense (rows/k, k*hidden)
    # layout with segmented per-row reductions to avoid masked partial stores;
    # typical transformer hidden sizes (>=128) don't need it.
    out = pl.pallas_call(
        _layernorm_kernel,
        out_shape=jax.ShapeDtypeStruct((rows, hidden), x.dtype),
        grid_spec=pltpu.PrefetchScalarGridSpec(
            num_scalar_prefetch=0,
            grid=grid,
            in_specs=[
                pl.BlockSpec(memory_space=pltpu.MemorySpace.SMEM),  # alpha (1,)
                pl.BlockSpec(memory_space=pltpu.MemorySpace.SMEM),  # beta  (1,)
                pl.BlockSpec((row_tile, hidden), lambda i: (i, 0)),
            ],
            out_specs=pl.BlockSpec((row_tile, hidden), lambda i: (i, 0)),
        ),
        compiler_params=pltpu.CompilerParams(
            dimension_semantics=("parallel",),   # shards grid across TCs on v7x
            vmem_limit_bytes=vmem_limit_bytes,
        ),
    )(alpha, beta, x2)

    return out.reshape(orig_shape)


if __name__ == "__main__":
    key = jax.random.PRNGKey(0)
    batch, seq, hidden = 2, 8, 32
    x = jax.random.normal(key, (batch, seq, hidden), dtype=jnp.float32)

    # Deterministic parameters matching nn.Parameter(torch.ones(1)/zeros(1)).
    alpha = jnp.ones((1,), dtype=jnp.float32)
    beta = jnp.zeros((1,), dtype=jnp.float32)

    y = layer_normalization(x, alpha, beta)
    jax.block_until_ready(y)

    # Reference (pure JAX, same unbiased-std + std+eps semantics as the module).
    mean = jnp.mean(x, axis=-1, keepdims=True)
    std = jnp.sqrt(jnp.sum((x - mean) ** 2, axis=-1, keepdims=True) / (hidden - 1))
    ref = alpha[0] * (x - mean) / (std + EPS) + beta[0]
    assert jnp.allclose(y, ref, atol=1e-4, rtol=1e-4), float(jnp.max(jnp.abs(y - ref)))

    print("KERNEL_OK")
</pallas_src>

<mosaic_0001>
module attributes {stable_mosaic.version = 11 : i64} {
  func.func @_layernorm_kernel(%arg0: i32, %arg1: memref<1xf32, #tpu.memory_space<smem>>, %arg2: memref<1xf32, #tpu.memory_space<smem>>, %arg3: memref<8x32xf32, #tpu.memory_space<vmem>>, %arg4: memref<8x32xf32, #tpu.memory_space<vmem>>) attributes {dimension_semantics = [#tpu.dimension_semantics<parallel>], iteration_bounds = array<i64: 2>, scalar_prefetch = 0 : i64, scratch_operands = 0 : i64, tpu.core_type = #tpu.core_type<tc>, window_params = [{transform_indices = @transform_0, window_bounds = array<i64: 1>}, {transform_indices = @transform_1, window_bounds = array<i64: 1>}, {transform_indices = @transform_2, window_bounds = array<i64: 8, 32>}, {transform_indices = @transform_3, window_bounds = array<i64: 8, 32>}]} {
    %c0 = arith.constant 0 : index
    %c0_0 = arith.constant 0 : index
    %0 = vector.load %arg3[%c0, %c0_0] : memref<8x32xf32, #tpu.memory_space<vmem>>, vector<8x32xf32>
    %cst = arith.constant dense<0.000000e+00> : vector<8xf32>
    %1 = vector.multi_reduction <add>, %0, %cst [1] : vector<8x32xf32> to vector<8xf32>
    %2 = vector.shape_cast %1 : vector<8xf32> to vector<8x1xf32>
    %3 = arith.mulf %0, %0 : vector<8x32xf32>
    %cst_1 = arith.constant dense<0.000000e+00> : vector<8xf32>
    %4 = vector.multi_reduction <add>, %3, %cst_1 [1] : vector<8x32xf32> to vector<8xf32>
    %5 = vector.shape_cast %4 : vector<8xf32> to vector<8x1xf32>
    %cst_2 = arith.constant 3.125000e-02 : f32
    %6 = vector.broadcast %cst_2 : f32 to vector<8x1xf32>
    %7 = arith.mulf %2, %6 : vector<8x1xf32>
    %cst_3 = arith.constant 3.200000e+01 : f32
    %8 = vector.broadcast %cst_3 : f32 to vector<8x1xf32>
    %9 = arith.mulf %8, %7 : vector<8x1xf32>
    %10 = arith.mulf %9, %7 : vector<8x1xf32>
    %11 = arith.subf %5, %10 : vector<8x1xf32>
    %cst_4 = arith.constant 0.0322580636 : f32
    %12 = vector.broadcast %cst_4 : f32 to vector<8x1xf32>
    %13 = arith.mulf %11, %12 : vector<8x1xf32>
    %cst_5 = arith.constant 0.000000e+00 : f32
    %14 = vector.broadcast %cst_5 : f32 to vector<8x1xf32>
    %15 = arith.maximumf %13, %14 : vector<8x1xf32>
    %16 = math.sqrt %15 : vector<8x1xf32>
    %cst_6 = arith.constant 9.99999997E-7 : f32
    %17 = vector.broadcast %cst_6 : f32 to vector<8x1xf32>
    %18 = arith.addf %16, %17 : vector<8x1xf32>
    %19 = tpu.reciprocal %18 : vector<8x1xf32> -> vector<8x1xf32>
    %c0_7 = arith.constant 0 : index
    %20 = memref.load %arg1[%c0_7] : memref<1xf32, #tpu.memory_space<smem>>
    %21 = vector.broadcast %20 : f32 to vector<8x1xf32>
    %22 = arith.mulf %21, %19 : vector<8x1xf32>
    %c0_8 = arith.constant 0 : index
    %23 = memref.load %arg2[%c0_8] : memref<1xf32, #tpu.memory_space<smem>>
    %24 = arith.mulf %7, %22 : vector<8x1xf32>
    %25 = vector.broadcast %23 : f32 to vector<8x1xf32>
    %26 = arith.subf %25, %24 : vector<8x1xf32>
    %27 = vector.broadcast %22 : vector<8x1xf32> to vector<8x32xf32>
    %28 = arith.mulf %0, %27 : vector<8x32xf32>
    %29 = vector.broadcast %26 : vector<8x1xf32> to vector<8x32xf32>
    %30 = arith.addf %28, %29 : vector<8x32xf32>
    %c0_9 = arith.constant 0 : index
    %c0_10 = arith.constant 0 : index
    %31 = vector.load %arg4[%c0_9, %c0_10] : memref<8x32xf32, #tpu.memory_space<vmem>>, vector<8x32xf32>
    tpu.vector_store %arg4[%c0_9, %c0_10], %30 {strides = array<i32>} : memref<8x32xf32, #tpu.memory_space<vmem>>, vector<8x32xf32>,
    return
  }
  func.func @transform_0(%arg0: i32) -> i32 {
    %c0_i32 = arith.constant 0 : i32
    %c0_i32_0 = arith.constant 0 : i32
    return %c0_i32 : i32
  }
  func.func @transform_1(%arg0: i32) -> i32 {
    %c0_i32 = arith.constant 0 : i32
    %c0_i32_0 = arith.constant 0 : i32
    return %c0_i32 : i32
  }
  func.func @transform_2(%arg0: i32) -> (i32, i32) {
    %c0_i32 = arith.constant 0 : i32
    %c0_i32_0 = arith.constant 0 : i32
    return %arg0, %c0_i32 : i32, i32
  }
  func.func @transform_3(%arg0: i32) -> (i32, i32) {
    %c0_i32 = arith.constant 0 : i32
    %c0_i32_0 = arith.constant 0 : i32
    return %arg0, %c0_i32 : i32, i32
  }
}

</mosaic_0001>

<llo_original>
// kernel: tpu_custom_call.1
$region0: #{tpu_custom_call.1}
  #allocation0 [shape = 'u32[]', space=smem, size = 0x4, offset = 0x4, fixed_abs, tag = 'smem constant byte address 0x4 - core index']
  #allocation1 [shape = 'u32[72,128]{1,0:T(1,128)}', space=vmem, size = 0x9000, scoped, tag = 'internal scratch']
  #allocation2 [shape = 'f32[1]{0:T(128)S(6)}', space=smem, size = 0x200, scoped, tag = 'scoped memory for tpu_custom_call.1']
  #allocation3 [shape = 'f32[1]{0:T(128)S(6)}', space=smem, size = 0x200, scoped, tag = 'scoped memory for tpu_custom_call.1']
  %s0 = inlined_call_operand.<no memory space> [shape: f32[1], index: 0, kind: input, shape index: {}]
  %s1 = inlined_call_operand.<no memory space> [shape: f32[1], index: 1, kind: input, shape index: {}]
  %s2 = inlined_call_operand.hbm [shape: f32[16,32], index: 2, kind: input, shape index: {}]
  %s3 = inlined_call_operand.hbm [shape: f32[16,32], index: 3, kind: output, shape index: {}]
  %s4 = sld [smem:[#allocation0]]
  $region49: #{tpu_custom_call.1} parent=0
    _
  %s6 = ssub.s32 1, %s4
  %s7 = scalar_select 0, %s6, %s4
  %8 = sst [smem:[#allocation2]] %s0
  %9 = sst [smem:[#allocation3]] %s1
  $region1: #{tpu_custom_call.1} parent=0
    #allocation4 [shape = 'u8[8192]{0}', space=vmem, size = 0x2000, scoped, tag = 'input window, operand 2']
    #allocation5 [shape = 's32[2]{0}', space=sflag, size = 0x8, scoped, tag = 'scoped memory for tpu_custom_call.1']
    #allocation6 [shape = 's32[2]{0}', space=sflag, size = 0x8, scoped, tag = 'scoped memory for tpu_custom_call.1']
    #allocation7 [shape = 'u8[8192]{0}', space=vmem, size = 0x2000, scoped, tag = 'output window, operand 0']
    %10 = vsyncpa [#allocation5], 0
    %s11 = scalar_lea.sflag [#allocation5], 1
    %12 = vsyncpa %s11, 0
    %13 = vsyncpa [#allocation6], 0
    %s14 = scalar_lea.sflag [#allocation6], 1
    %15 = vsyncpa %s14, 0
    loop: start=0, step=1, limit=4
    $region2: #{tpu_custom_call.1} parent=1 // loop_pre_header
      _
    $region3: #{tpu_custom_call.1} parent=1 // loop_header
      %s17 = sphi 0, %s21
      %p18 = scmp.ge.s32.totalorder %s17, 4
      %s25 = sphi 0, %s25
      %s27 = sphi 0, %s25
      %s28 = sphi 0, %s27
      %s42 = sphi 0, %s28
      %s46 = sphi 0, %s46
      %s48 = sphi 0, %s46
      %s49 = sphi 0, %s48
      %s63 = sphi 0, %s49
      %s69 = sphi 0, %s71
      %s72 = sphi 0, %s69
      %s73 = sphi 0, %s72
      %s89 = sphi 0, %s73
      %s95 = sphi 0, %s97
      %s98 = sphi 0, %s95
      %s99 = sphi 0, %s98
      %s115 = sphi 0, %s99
    $region4: #{tpu_custom_call.1} parent=1 // loop_header_branch
      %20 = sbr.rel (%p18) target = $region8
    $region5: #{tpu_custom_call.1} parent=1 // loop_body
      %s22 = ssub.s32 %s17, 1
      %s23 = ssub.s32 %s17, 2
      %s24 = sadd.s32 %s17, 1
      %s26 = sadd.s32 %s25, 1
      %p29 = scmp.eq.s32.totalorder %s17, 1
      %p30 = scmp.ne.s32.totalorder %s25, %s27
      %p31 = scmp.eq.s32.totalorder %s17, 0
      %p32 = por %p30, %p31
      %p33 = scmp.ne.s32.totalorder %s25, %s27
      %p34 = scmp.eq.s32.totalorder %s22, 1
      %p35 = por %p33, %p34
      %p36 = scmp.ne.s32.totalorder %s27, %s28
      %p37 = scmp.eq.s32.totalorder %s22, 0
      %p38 = por %p36, %p37
      %p39 = scmp.ne.s32.totalorder %s27, %s28
      %p40 = scmp.eq.s32.totalorder %s23, 1
      %p41 = por %p39, %p40
      %p43 = scmp.ne.s32.totalorder %s28, %s42
      %p44 = scmp.eq.s32.totalorder %s23, 0
      %p45 = por %p43, %p44
      %s47 = sadd.s32 %s46, 1
      %p50 = scmp.eq.s32.totalorder %s17, 1
      %p51 = scmp.ne.s32.totalorder %s46, %s48
      %p52 = scmp.eq.s32.totalorder %s17, 0
      %p53 = por %p51, %p52
      %p54 = scmp.ne.s32.totalorder %s46, %s48
      %p55 = scmp.eq.s32.totalorder %s22, 1
      %p56 = por %p54, %p55
      %p57 = scmp.ne.s32.totalorder %s48, %s49
      %p58 = scmp.eq.s32.totalorder %s22, 0
      %p59 = por %p57, %p58
      %p60 = scmp.ne.s32.totalorder %s48, %s49
      %p61 = scmp.eq.s32.totalorder %s23, 1
      %p62 = por %p60, %p61
      %p64 = scmp.ne.s32.totalorder %s49, %s63
      %p65 = scmp.eq.s32.totalorder %s23, 0
      %p66 = por %p64, %p65
      %s67 = ssub.s32 %s17, %s24
      %p68 = scmp.eq.s32.totalorder %s67, 0
      %s70 = sadd.s32 %s69, 1
      %s71 = scalar_select %p68, %s69, %s70
      %p74 = pneg %p68
      %p75 = scmp.eq.s32.totalorder %s17, 1
      %p76 = por %p74, %p75
      %p77 = scmp.ne.s32.totalorder %s69, %s72
      %p78 = scmp.eq.s32.totalorder %s17, 0
      %p79 = por %p77, %p78
      %p80 = scmp.ne.s32.totalorder %s69, %s72
      %p81 = scmp.eq.s32.totalorder %s22, 1
      %p82 = por %p80, %p81
      %p83 = scmp.ne.s32.totalorder %s72, %s73
      %p84 = scmp.eq.s32.totalorder %s22, 0
      %p85 = por %p83, %p84
      %p86 = scmp.ne.s32.totalorder %s72, %s73
      %p87 = scmp.eq.s32.totalorder %s23, 1
      %p88 = por %p86, %p87
      %p90 = scmp.ne.s32.totalorder %s73, %s89
      %p91 = scmp.eq.s32.totalorder %s23, 0
      %p92 = por %p90, %p91
      %s93 = ssub.s32 %s17, %s24
      %p94 = scmp.eq.s32.totalorder %s93, 0
      %s96 = sadd.s32 %s95, 1
      %s97 = scalar_select %p94, %s95, %s96
      %p100 = pneg %p94
      %p101 = scmp.eq.s32.totalorder %s17, 1
      %p102 = por %p100, %p101
      %p103 = scmp.ne.s32.totalorder %s95, %s98
      %p104 = scmp.eq.s32.totalorder %s17, 0
      %p105 = por %p103, %p104
      %p106 = scmp.ne.s32.totalorder %s95, %s98
      %p107 = scmp.eq.s32.totalorder %s22, 1
      %p108 = por %p106, %p107
      %p109 = scmp.ne.s32.totalorder %s98, %s99
      %p110 = scmp.eq.s32.totalorder %s22, 0
      %p111 = por %p109, %p110
      %p112 = scmp.ne.s32.totalorder %s98, %s99
      %p113 = scmp.eq.s32.totalorder %s23, 1
      %p114 = por %p112, %p113
      %p116 = scmp.ne.s32.totalorder %s99, %s115
      %p117 = scmp.eq.s32.totalorder %s23, 0
      %p118 = por %p116, %p117
      %p119 = scmp.le.s32.totalorder 1, %s17
      %p120 = scmp.lt.s32.totalorder %s17, 3
      %p121 = pnand %p119, %p120
      %p122 = pneg %p121
      // Predicated region
      $region9: #{tpu_custom_call.1} parent=5 // pred_check
        _
      $region10: #{tpu_custom_call.1} parent=5 // pred_check_branch
        %124 = sbr.rel (%p121) target = $region12
      $region11: #{tpu_custom_call.1} parent=5 // pred_region
        %s125 = ssub.s32 %s17, 1
        // Predicated region
        $region13: #{tpu_custom_call.1} parent=11 // pred_check
          %p126 = pneg %p38
        $region14: #{tpu_custom_call.1} parent=11 // pred_check_branch
          %128 = sbr.rel (%p126) target = $region16
        $region15: #{tpu_custom_call.1} parent=11 // pred_region
          _
        $region16: #{tpu_custom_call.1} parent=11 // pred_fallthru
          _
        // Predicated region
        $region17: #{tpu_custom_call.1} parent=11 // pred_check
          %p129 = pneg %p59
        $region18: #{tpu_custom_call.1} parent=11 // pred_check_branch
          %131 = sbr.rel (%p129) target = $region20
        $region19: #{tpu_custom_call.1} parent=11 // pred_region
          _
        $region20: #{tpu_custom_call.1} parent=11 // pred_fallthru
          _
      $region12: #{tpu_custom_call.1} parent=5 // pred_fallthru
        _
      %p132 = scmp.lt.s32.totalorder %s17, 2
      // Predicated region
      $region21: #{tpu_custom_call.1} parent=5 // pred_check
        %p133 = pneg %p132
      $region22: #{tpu_custom_call.1} parent=5 // pred_check_branch
        %135 = sbr.rel (%p133) target = $region24
      $region23: #{tpu_custom_call.1} parent=5 // pred_region
        // Predicated region
        $region25: #{tpu_custom_call.1} parent=23 // pred_check
          %p136 = pneg %p79
        $region26: #{tpu_custom_call.1} parent=23 // pred_check_branch
          %138 = sbr.rel (%p136) target = $region28
        $region27: #{tpu_custom_call.1} parent=23 // pred_region
          %s139 = sand.u32 %s69, 1
          %s140 = scalar_lea.sflag [#allocation5], %s139
          %s141 = sand.u32 %s69, 1
          %s142 = smul.addr %s141, 8
          %s143 = scalar_lea.vmem [#allocation4], %s142
          %145 = vsyncadd %s140, 0
          %s146 = smul.addr %s17, 8
          %s147 = scalar_lea.hbm %s2, %s146
          %s149 = sshll.u32 %s147, 4
          %s150 = int_to_ptr.hbm [resolvable:$true] %s149
          %s151 = sshll.u32 %s143, 4
          %s152 = int_to_ptr.vmem [resolvable:$true] %s151
          %154 = dma.hbm_to_vmem [thread:$0]  %s150, 128, %s152, %s140
        $region28: #{tpu_custom_call.1} parent=23 // pred_fallthru
          _
      $region24: #{tpu_custom_call.1} parent=5 // pred_fallthru
        _
      %p155 = scmp.le.s32.totalorder 1, %s17
      %p156 = scmp.lt.s32.totalorder %s17, 3
      %p157 = pnand %p155, %p156
      %p158 = pneg %p157
      // Predicated region
      $region29: #{tpu_custom_call.1} parent=5 // pred_check
        _
      $region30: #{tpu_custom_call.1} parent=5 // pred_check_branch
        %160 = sbr.rel (%p157) target = $region32
      $region31: #{tpu_custom_call.1} parent=5 // pred_region
        %s161 = ssub.s32 %s17, 1
        %s162 = sand.u32 %s72, 1
        %s163 = scalar_lea.sflag [#allocation5], %s162
        %s164 = sand.u32 %s72, 1
        %s165 = smul.addr %s164, 8
        %s166 = scalar_lea.vmem [#allocation4], %s165
        // Predicated region
        $region33: #{tpu_custom_call.1} parent=31 // pred_check
          %p167 = pneg %p85
        $region34: #{tpu_custom_call.1} parent=31 // pred_check_branch
          %169 = sbr.rel (%p167) target = $region36
        $region35: #{tpu_custom_call.1} parent=31 // pred_region
          %171 = dma.done %s163, 128
        $region36: #{tpu_custom_call.1} parent=31 // pred_fallthru
          _
        %p172 = pneg %p38
        %p173 = pneg %p35
        %p174 = pneg %p59
        %p175 = pneg %p56
        %s176 = sand.u32 %s72, 1
        %s177 = scalar_lea.sflag [#allocation5], %s176
        %s178 = sand.u32 %s72, 1
        %s179 = smul.addr %s178, 8
        %s180 = scalar_lea.vmem [#allocation4], %s179
        %p181 = pneg %p85
        %p182 = pneg %p82
        %p183 = pneg %p111
        %p184 = pneg %p108
        %s185 = sand.u32 %s98, 1
        %s186 = scalar_lea.sflag [#allocation6], %s185
        %s187 = sand.u32 %s98, 1
        %s188 = smul.addr %s187, 8
        %s189 = scalar_lea.vmem [#allocation7], %s188
        %v190 = vld [vmem:[%s166] sm:$0xff]
        %vm191 = vcmask 261120
        %v192 = vsel %vm191, %v190, 0.0
        %193 = vadd.xlane.f32.xlu0 %v192
        %v194 = vpop.xlane.xlu0 %193
        %v195 = vmul.f32 %v190, %v190
        %v196 = vsel %vm191, %v195, 0.0
        %197 = vadd.xlane.f32.xlu0 %v196
        %v198 = vpop.xlane.xlu0 %197
        %v199 = vmul.f32 %v194, 0.03125
        %v200 = vmul.f32 %v199, 32.0
        %v201 = vmul.f32 %v200, %v199
        %v202 = vsub.f32 %v198, %v201
        %v203 = vmul.f32 %v202, 0.032258064
        %v204 = vmax.f32 %v203, 0.0
        %v205 = vrsqrt.pop %v204
        %v206 = vmul.f32 %v205, %v204
        %v207 = vmul.f32 %v206, %v205
        %v208 = vmul.f32 0.5, %v207
        %v209 = vsub.f32 1.5, %v208
        %v210 = vmul.f32 %v205, %v209
        %v211 = vmul.f32 %v204, %v210
        %vm212 = vcmp.eq.f32.partialorder %v204, inf
        %v213 = vsel %vm212, %v204, %v211
        %vm214 = vcmp.eq.f32.partialorder %v204, 0.0
        %v215 = vand.u32 %v204, 2147483648
        %v216 = vsel %vm214, %v215, %v213
        %v217 = vadd.f32 %v216, 1e-06
        %v218 = vrcp.pop %v217
        %v219 = vmul.f32 %v217, %v218
        %v220 = vsub.f32 1.0, %v219
        %v221 = vmul.f32 %v218, %v220
        %v222 = vadd.f32 %v218, %v221
        %vm223 = vweird.f32 %v217
        %vm224 = vweird.f32 %v218
        %vm225 = vmor %vm223, %vm224
        %v226 = vsel %vm225, %v218, %v222
        %v227 = vand.u32 2147483647, %v217
        %vm228 = vcmp.eq.f32.partialorder %v227, 8.507059e+37
        %v229 = vand.u32 %v217, 2147483648
        %v230 = vor.u32 1.1754944e-38, %v229
        %v231 = vsel %vm228, %v230, %v226
        %s232 = sld [smem:[#allocation2]]
        %v233 = vstv %s232
        %v234 = vmul.f32 %v233, %v231
        %s235 = sld [smem:[#allocation3]]
        %v236 = vmul.f32 %v199, %v234
        %v237 = vstv %s235
        %v238 = vsub.f32 %v237, %v236
        %v239 = vmul.f32 %v190, %v234
        %v240 = vadd.f32 %v239, %v238
        %241 = vst.msk [vmem:[%s189] sm:$0xff] %vm191, %v240
        %s242 = sand.u32 %s98, 1
        %s243 = scalar_lea.sflag [#allocation6], %s242
        %s244 = sand.u32 %s98, 1
        %s245 = smul.addr %s244, 8
        %s246 = scalar_lea.vmem [#allocation7], %s245
        // Predicated region
        $region37: #{tpu_custom_call.1} parent=31 // pred_check
          %p247 = pneg %p108
        $region38: #{tpu_custom_call.1} parent=31 // pred_check_branch
          %249 = sbr.rel (%p247) target = $region40
        $region39: #{tpu_custom_call.1} parent=31 // pred_region
          %251 = vsyncadd %s243, 0
          %s252 = smul.addr %s22, 8
          %s253 = scalar_lea.hbm %s3, %s252
          %s255 = sshll.u32 %s246, 4
          %s256 = int_to_ptr.vmem [resolvable:$true] %s255
          %s257 = sshll.u32 %s253, 4
          %s258 = int_to_ptr.hbm [resolvable:$true] %s257
          %260 = dma.vmem_to_hbm [thread:$0]  %s256, 128, %s258, %s243
        $region40: #{tpu_custom_call.1} parent=31 // pred_fallthru
          _
      $region32: #{tpu_custom_call.1} parent=5 // pred_fallthru
        _
      %p261 = scmp.le.s32.totalorder 2, %s17
      // Predicated region
      $region41: #{tpu_custom_call.1} parent=5 // pred_check
        %p262 = pneg %p261
      $region42: #{tpu_custom_call.1} parent=5 // pred_check_branch
        %264 = sbr.rel (%p262) target = $region44
      $region43: #{tpu_custom_call.1} parent=5 // pred_region
        %s265 = ssub.s32 %s17, 2
        // Predicated region
        $region45: #{tpu_custom_call.1} parent=43 // pred_check
          %p266 = pneg %p114
        $region46: #{tpu_custom_call.1} parent=43 // pred_check_branch
          %268 = sbr.rel (%p266) target = $region48
        $region47: #{tpu_custom_call.1} parent=43 // pred_region
          %s269 = sand.u32 %s99, 1
          %s270 = scalar_lea.sflag [#allocation6], %s269
          %s271 = sand.u32 %s99, 1
          %s272 = smul.addr %s271, 8
          %s273 = scalar_lea.vmem [#allocation7], %s272
          %275 = dma.done %s270, 128
        $region48: #{tpu_custom_call.1} parent=43 // pred_fallthru
          _
      $region44: #{tpu_custom_call.1} parent=5 // pred_fallthru
        _
    $region6: #{tpu_custom_call.1} parent=1 // loop_footer
      %s21 = sadd.s32 1, %s17
    $region7: #{tpu_custom_call.1} parent=1 // loop_footer_branch
      %16 = sbr.rel target = $region3
    $region8: #{tpu_custom_call.1} parent=1 // loop_exit
      _
    %276 = vsyncpa [#allocation5], 1
    %s277 = scalar_lea.sflag [#allocation5], 1
    %278 = vsyncpa %s277, 1
    %279 = vsyncpa [#allocation6], 1
    %s280 = scalar_lea.sflag [#allocation6], 1
    %281 = vsyncpa %s280, 1

</llo_original>
